<compile_context>
chip_gen: v7x
topology: tpu7x:2x2x1
jax: 0.10.0
libtpu: 0.0.40
codegen_flags: <defaults>
</compile_context>

<pallas_src>
import jax
import jax.numpy as jnp
from jax.experimental import pallas as pl
from jax.experimental.pallas import tpu as pltpu


ALPHA = 0.05            # module default __init__ arg
LANES = 128             # lane width (last dim of every vreg)
MAX_TILE_ROWS = 1024    # (1024, 128) f32 = 512 KiB per input per buffer


def _num_tensorcores():
    """Best-effort TensorCores-per-chip: 2 on v7x, 1 on v5e/v6e/unknown.

    Returning 1 is always *correct* (the leading grid axis just has size 1);
    this is purely a perf decision, so detection errs on the safe side.
    """
    try:
        kind = jax.devices()[0].device_kind.lower()
    except Exception:
        return 1
    if "v7" in kind or "7x" in kind or kind.startswith("tpu7"):
        return 2
    return 1


def _make_kernel(n_valid, block_rows, blocks_per_part, alpha):
    """Build the kernel with static sizes / constants closed over."""
    inv_denom = 1.0 / (alpha + 0.0001)
    block_elems = block_rows * LANES
    # First logical block index that can contain an element index >= n_valid
    # (zero-pad tail, implicit edge-block garbage, or a phantom block).  Blocks
    # below this index are fully valid and skip the masking work entirely.
    tail_start_block = n_valid // block_elems

    def kernel(pred_ref, true_ref, out_ref, acc_ref):
        c = pl.program_id(0)          # partition (separate TensorCore on v7x)
        i = pl.program_id(1)          # sequential block index within partition

        @pl.when(i == 0)
        def _():
            acc_ref[...] = jnp.zeros_like(acc_ref)

        x = pred_ref[...].astype(jnp.float32)
        t = true_ref[...].astype(jnp.float32)

        # Shared exp(-|x|) feeds both the stable BCE log-term and the sigmoid.
        e = jnp.exp(-jnp.abs(x))
        # Numerically-stable BCEWithLogitsLoss (reduction='none'):
        #   max(x, 0) - x*t + log(1 + exp(-|x|))
        bce = jnp.maximum(x, 0.0) - x * t + jnp.log1p(e)

        # sigmoid(x) = 1/(1+e) for x>=0, e/(1+e) for x<0 (both stable).
        # NOTE: pl.reciprocal(approx=True) deliberately not used here -- the
        # vrcp error would be amplified ~20x through exp((dx-1)/(alpha+1e-4)).
        inv_1pe = 1.0 / (1.0 + e)
        p = jnp.where(x >= 0.0, inv_1pe, e * inv_1pe)

        dx = p - t
        alpha_factor = 1.0 - jnp.exp((dx - 1.0) * inv_denom)
        loss = bce * alpha_factor

        # Unclamped logical block index (phantom steps DMA the clamped last
        # real block, but are fully masked below via this unclamped index).
        block_idx = c * blocks_per_part + i

        @pl.when(block_idx < tail_start_block)
        def _():
            # Fully-valid block: no masking work; pure VPU tree-reduce to (8,128).
            acc_ref[...] += loss.reshape(block_rows // 8, 8, LANES).sum(axis=0)

        @pl.when(block_idx >= tail_start_block)
        def _():
            # Block may contain zero-pad / edge-block garbage / phantom data:
            # build the element-index mask in-kernel (no extra HBM stream).
            # int32 indexing is fine for any loss tensor < 2**31 elements.
            base = block_idx * block_elems
            row_ids = jax.lax.broadcasted_iota(jnp.int32, (block_rows, LANES), 0)
            lane_ids = jax.lax.broadcasted_iota(jnp.int32, (block_rows, LANES), 1)
            elem_idx = base + row_ids * LANES + lane_ids
            masked = jnp.where(elem_idx < n_valid, loss, 0.0)   # select: NaN-safe
            acc_ref[...] += masked.reshape(block_rows // 8, 8, LANES).sum(axis=0)

        @pl.when(i == pl.num_programs(1) - 1)
        def _():
            out_ref[0, 0] = jnp.sum(acc_ref[...])

    return kernel


def bce_blur_with_logits_loss(pred, true, alpha=ALPHA, parts=None):
    """Pallas implementation of BCEBlurWithLogitsLoss(alpha).forward(pred, true)."""
    assert pred.shape == true.shape
    n_elems = pred.size
    num_tc = _num_tensorcores() if parts is None else int(parts)

    # --- choose tiling (static, shape-derived) -------------------------------
    rows = max(8, -(-n_elems // LANES))                 # at least one (8,128) tile
    per_part_rows = -(-rows // num_tc)
    block_rows = min(MAX_TILE_ROWS, ((per_part_rows + 7) // 8) * 8)
    block_rows = min(block_rows, (rows // 8) * 8)       # every block starts in-bounds
    blocks_real = -(-rows // block_rows)
    num_parts = min(num_tc, blocks_real)
    blocks_per_part = -(-blocks_real // num_parts)

    # --- flatten (free when N % 128 == 0; small pad copy otherwise) ----------
    pred_flat = pred.reshape(-1)
    true_flat = true.reshape(-1)
    lane_pad = rows * LANES - n_elems
    if lane_pad:
        pred_flat = jnp.pad(pred_flat, (0, lane_pad))
        true_flat = jnp.pad(true_flat, (0, lane_pad))
    pred2d = pred_flat.reshape(rows, LANES)
    true2d = true_flat.reshape(rows, LANES)

    def in_map(c, i):
        # Clamp phantom trailing steps (blocks_real % num_parts != 0) onto the
        # last real block so the auto-DMA never starts out of bounds; their
        # contribution is zeroed in-kernel via the element-index mask.
        return (jnp.minimum(c * blocks_per_part + i, blocks_real - 1), 0)

    tile_spec = pl.BlockSpec((block_rows, LANES), in_map)

    partials = pl.pallas_call(
        _make_kernel(n_elems, block_rows, blocks_per_part, alpha),
        out_shape=jax.ShapeDtypeStruct((num_parts, 1), jnp.float32),
        grid_spec=pltpu.PrefetchScalarGridSpec(
            num_scalar_prefetch=0,
            grid=(num_parts, blocks_per_part),
            in_specs=[tile_spec, tile_spec],
            out_specs=pl.BlockSpec((1, 1), lambda c, i: (c, 0),
                                   memory_space=pltpu.SMEM),
            scratch_shapes=[pltpu.VMEM((8, LANES), jnp.float32)],
        ),
        compiler_params=pltpu.CompilerParams(
            dimension_semantics=("parallel", "arbitrary")),
    )(pred2d, true2d)

    return jnp.sum(partials) / jnp.float32(n_elems)


def _reference(pred, true, alpha=ALPHA):
    x = pred.astype(jnp.float32)
    t = true.astype(jnp.float32)
    bce = jnp.maximum(x, 0.0) - x * t + jnp.log1p(jnp.exp(-jnp.abs(x)))
    p = jax.nn.sigmoid(x)
    dx = p - t
    af = 1.0 - jnp.exp((dx - 1.0) / (alpha + 0.0001))
    return jnp.mean(bce * af)


if __name__ == "__main__":
    key = jax.random.PRNGKey(0)
    k1, k2, k3, k4, k5, k6, k7, k8 = jax.random.split(key, 8)

    fn = jax.jit(bce_blur_with_logits_loss, static_argnames=("alpha", "parts"))

    def check(pred, true, **kw):
        out = jax.block_until_ready(fn(pred, true, **kw))
        ref = _reference(pred, true)
        assert jnp.allclose(out, ref, atol=1e-5, rtol=1e-4), (out, ref, kw)

    # Small NCHW-shaped inputs consistent with a detection-head loss.
    pred1 = jax.random.normal(k1, (2, 4, 16, 16), dtype=jnp.float32)
    true1 = (jax.random.uniform(k2, (2, 4, 16, 16)) > 0.5).astype(jnp.float32)
    check(pred1, true1)

    # Multi-block accumulation + implicit edge-block (row remainder) masking.
    pred2 = jax.random.normal(k3, (4, 8, 80, 80), dtype=jnp.float32)
    true2 = (jax.random.uniform(k4, (4, 8, 80, 80)) > 0.5).astype(jnp.float32)
    check(pred2, true2)

    # Non-lane-divisible element count (tail-pad path) + forced 2 partitions:
    # exercises the v7x dual-TensorCore code path even on a single-TC chip.
    pred3 = jax.random.normal(k5, (3, 5, 40, 13), dtype=jnp.float32)
    true3 = (jax.random.uniform(k6, (3, 5, 40, 13)) > 0.5).astype(jnp.float32)
    check(pred3, true3, parts=2)

    # Odd real-block count with 2 partitions -> phantom step clamped onto the
    # last real block by the index_map and fully masked in-kernel.
    pred4 = jax.random.normal(k7, (4, 8, 96, 96), dtype=jnp.float32)
    true4 = (jax.random.uniform(k8, (4, 8, 96, 96)) > 0.5).astype(jnp.float32)
    check(pred4, true4, parts=2)

    print("KERNEL_OK")
</pallas_src>

<mosaic_0001>
module attributes {stable_mosaic.version = 11 : i64} {
  func.func @kernel(%arg0: i32, %arg1: i32, %arg2: memref<16x128xf32, #tpu.memory_space<vmem>>, %arg3: memref<16x128xf32, #tpu.memory_space<vmem>>, %arg4: memref<1x1xf32, #tpu.memory_space<smem>>, %arg5: memref<8x128xf32, #tpu.memory_space<vmem>>) attributes {dimension_semantics = [#tpu.dimension_semantics<parallel>, #tpu.dimension_semantics<arbitrary>], iteration_bounds = array<i64: 1, 1>, scalar_prefetch = 0 : i64, scratch_operands = 1 : i64, tpu.core_type = #tpu.core_type<tc>, window_params = [{transform_indices = @transform_0, window_bounds = array<i64: 16, 128>}, {transform_indices = @transform_1, window_bounds = array<i64: 16, 128>}, {transform_indices = @transform_2, window_bounds = array<i64: 1, 1>}]} {
    %c0_i32 = arith.constant 0 : i32
    %0 = arith.cmpi eq, %arg1, %c0_i32 : i32
    %1 = arith.extui %0 : i1 to i32
    %c0_i32_0 = arith.constant 0 : i32
    %2 = arith.cmpi ne, %1, %c0_i32_0 : i32
    scf.if %2 {
      %cst_17 = arith.constant 0.000000e+00 : f32
      %43 = vector.broadcast %cst_17 : f32 to vector<8x128xf32>
      %c0_18 = arith.constant 0 : index
      %c0_19 = arith.constant 0 : index
      %44 = vector.load %arg5[%c0_18, %c0_19] : memref<8x128xf32, #tpu.memory_space<vmem>>, vector<8x128xf32>
      tpu.vector_store %arg5[%c0_18, %c0_19], %43 {strides = array<i32>} : memref<8x128xf32, #tpu.memory_space<vmem>>, vector<8x128xf32>,
    } else {
    }
    %c0 = arith.constant 0 : index
    %c0_1 = arith.constant 0 : index
    %3 = vector.load %arg2[%c0, %c0_1] : memref<16x128xf32, #tpu.memory_space<vmem>>, vector<16x128xf32>
    %c0_2 = arith.constant 0 : index
    %c0_3 = arith.constant 0 : index
    %4 = vector.load %arg3[%c0_2, %c0_3] : memref<16x128xf32, #tpu.memory_space<vmem>>, vector<16x128xf32>
    %5 = math.absf %3 : vector<16x128xf32>
    %cst = arith.constant 0.000000e+00 : f32
    %6 = vector.broadcast %cst : f32 to vector<16x128xf32>
    %7 = arith.subf %6, %5 : vector<16x128xf32>
    %8 = math.exp %7 : vector<16x128xf32>
    %cst_4 = arith.constant 0.000000e+00 : f32
    %9 = vector.broadcast %cst_4 : f32 to vector<16x128xf32>
    %10 = arith.maximumf %3, %9 : vector<16x128xf32>
    %11 = arith.mulf %3, %4 : vector<16x128xf32>
    %12 = arith.subf %10, %11 : vector<16x128xf32>
    %13 = math.log1p %8 : vector<16x128xf32>
    %14 = arith.addf %12, %13 : vector<16x128xf32>
    %cst_5 = arith.constant 1.000000e+00 : f32
    %15 = vector.broadcast %cst_5 : f32 to vector<16x128xf32>
    %16 = arith.addf %15, %8 : vector<16x128xf32>
    %cst_6 = arith.constant 1.000000e+00 : f32
    %17 = vector.broadcast %cst_6 : f32 to vector<16x128xf32>
    %18 = arith.divf %17, %16 : vector<16x128xf32>
    %cst_7 = arith.constant 0.000000e+00 : f32
    %19 = vector.broadcast %cst_7 : f32 to vector<16x128xf32>
    %20 = arith.cmpf oge, %3, %19 : vector<16x128xf32>
    %21 = arith.mulf %8, %18 : vector<16x128xf32>
    %22 = arith.select %20, %18, %21 : vector<16x128xi1>, vector<16x128xf32>
    %23 = arith.subf %22, %4 : vector<16x128xf32>
    %cst_8 = arith.constant 1.000000e+00 : f32
    %24 = vector.broadcast %cst_8 : f32 to vector<16x128xf32>
    %25 = arith.subf %23, %24 : vector<16x128xf32>
    %cst_9 = arith.constant 19.9600792 : f32
    %26 = vector.broadcast %cst_9 : f32 to vector<16x128xf32>
    %27 = arith.mulf %25, %26 : vector<16x128xf32>
    %28 = math.exp %27 : vector<16x128xf32>
    %cst_10 = arith.constant 1.000000e+00 : f32
    %29 = vector.broadcast %cst_10 : f32 to vector<16x128xf32>
    %30 = arith.subf %29, %28 : vector<16x128xf32>
    %31 = arith.mulf %14, %30 : vector<16x128xf32>
    %c1_i32 = arith.constant 1 : i32
    %32 = arith.muli %arg0, %c1_i32 : i32
    %33 = arith.addi %32, %arg1 : i32
    %c1_i32_11 = arith.constant 1 : i32
    %34 = arith.cmpi slt, %33, %c1_i32_11 : i32
    %35 = arith.extui %34 : i1 to i32
    %c0_i32_12 = arith.constant 0 : i32
    %36 = arith.cmpi ne, %35, %c0_i32_12 : i32
    scf.if %36 {
      %c0_17 = arith.constant 0 : index
      %c0_18 = arith.constant 0 : index
      %43 = vector.load %arg5[%c0_17, %c0_18] : memref<8x128xf32, #tpu.memory_space<vmem>>, vector<8x128xf32>
      %44 = vector.shape_cast %31 : vector<16x128xf32> to vector<2x8x128xf32>
      %cst_19 = arith.constant dense<0.000000e+00> : vector<8x128xf32>
      %45 = vector.multi_reduction <add>, %44, %cst_19 [0] : vector<2x8x128xf32> to vector<8x128xf32>
      %46 = arith.addf %43, %45 : vector<8x128xf32>
      %c0_20 = arith.constant 0 : index
      %c0_21 = arith.constant 0 : index
      %47 = vector.load %arg5[%c0_20, %c0_21] : memref<8x128xf32, #tpu.memory_space<vmem>>, vector<8x128xf32>
      tpu.vector_store %arg5[%c0_20, %c0_21], %46 {strides = array<i32>} : memref<8x128xf32, #tpu.memory_space<vmem>>, vector<8x128xf32>,
    } else {
    }
    %c1_i32_13 = arith.constant 1 : i32
    %37 = arith.cmpi sge, %33, %c1_i32_13 : i32
    %38 = arith.extui %37 : i1 to i32
    %c0_i32_14 = arith.constant 0 : i32
    %39 = arith.cmpi ne, %38, %c0_i32_14 : i32
    scf.if %39 {
      %c2048_i32 = arith.constant 2048 : i32
      %43 = arith.muli %33, %c2048_i32 : i32
      %44 = tpu.iota {dimensions = array<i32: 0>} : vector<16x128xi32>
      %45 = tpu.iota {dimensions = array<i32: 1>} : vector<16x128xi32>
      %c128_i32 = arith.constant 128 : i32
      %46 = vector.broadcast %c128_i32 : i32 to vector<16x128xi32>
      %47 = arith.muli %44, %46 : vector<16x128xi32>
      %48 = vector.broadcast %43 : i32 to vector<16x128xi32>
      %49 = arith.addi %48, %47 : vector<16x128xi32>
      %50 = arith.addi %49, %45 : vector<16x128xi32>
      %c2048_i32_17 = arith.constant 2048 : i32
      %51 = vector.broadcast %c2048_i32_17 : i32 to vector<16x128xi32>
      %52 = arith.cmpi slt, %50, %51 : vector<16x128xi32>
      %cst_18 = arith.constant 0.000000e+00 : f32
      %53 = vector.broadcast %cst_18 : f32 to vector<16x128xf32>
      %54 = arith.select %52, %31, %53 : vector<16x128xi1>, vector<16x128xf32>
      %c0_19 = arith.constant 0 : index
      %c0_20 = arith.constant 0 : index
      %55 = vector.load %arg5[%c0_19, %c0_20] : memref<8x128xf32, #tpu.memory_space<vmem>>, vector<8x128xf32>
      %56 = vector.shape_cast %54 : vector<16x128xf32> to vector<2x8x128xf32>
      %cst_21 = arith.constant dense<0.000000e+00> : vector<8x128xf32>
      %57 = vector.multi_reduction <add>, %56, %cst_21 [0] : vector<2x8x128xf32> to vector<8x128xf32>
      %58 = arith.addf %55, %57 : vector<8x128xf32>
      %c0_22 = arith.constant 0 : index
      %c0_23 = arith.constant 0 : index
      %59 = vector.load %arg5[%c0_22, %c0_23] : memref<8x128xf32, #tpu.memory_space<vmem>>, vector<8x128xf32>
      tpu.vector_store %arg5[%c0_22, %c0_23], %58 {strides = array<i32>} : memref<8x128xf32, #tpu.memory_space<vmem>>, vector<8x128xf32>,
    } else {
    }
    %c0_i32_15 = arith.constant 0 : i32
    %40 = arith.cmpi eq, %arg1, %c0_i32_15 : i32
    %41 = arith.extui %40 : i1 to i32
    %c0_i32_16 = arith.constant 0 : i32
    %42 = arith.cmpi ne, %41, %c0_i32_16 : i32
    scf.if %42 {
      %c0_17 = arith.constant 0 : index
      %c0_18 = arith.constant 0 : index
      %43 = vector.load %arg5[%c0_17, %c0_18] : memref<8x128xf32, #tpu.memory_space<vmem>>, vector<8x128xf32>
      %44 = vector.shape_cast %43 : vector<8x128xf32> to vector<1x8x128xf32>
      %cst_19 = arith.constant dense<0.000000e+00> : vector<1xf32>
      %45 = vector.multi_reduction <add>, %44, %cst_19 [1, 2] : vector<1x8x128xf32> to vector<1xf32>
      %46 = vector.shape_cast %45 : vector<1xf32> to vector<1x1x1xf32>
      %47 = vector.extract %46[0, 0, 0] : f32 from vector<1x1x1xf32>
      %c0_20 = arith.constant 0 : index
      %c0_21 = arith.constant 0 : index
      %48 = memref.load %arg4[%c0_20, %c0_21] : memref<1x1xf32, #tpu.memory_space<smem>>
      memref.store %47, %arg4[%c0_20, %c0_21] : memref<1x1xf32, #tpu.memory_space<smem>>
    } else {
    }
    return
  }
  func.func @transform_0(%arg0: i32, %arg1: i32) -> (i32, i32) {
    %c1_i32 = arith.constant 1 : i32
    %0 = arith.muli %arg0, %c1_i32 : i32
    %1 = arith.addi %0, %arg1 : i32
    %c0_i32 = arith.constant 0 : i32
    %2 = arith.minsi %1, %c0_i32 : i32
    %c0_i32_0 = arith.constant 0 : i32
    %c0_i32_1 = arith.constant 0 : i32
    return %2, %c0_i32_0 : i32, i32
  }
  func.func @transform_1(%arg0: i32, %arg1: i32) -> (i32, i32) {
    %c1_i32 = arith.constant 1 : i32
    %0 = arith.muli %arg0, %c1_i32 : i32
    %1 = arith.addi %0, %arg1 : i32
    %c0_i32 = arith.constant 0 : i32
    %2 = arith.minsi %1, %c0_i32 : i32
    %c0_i32_0 = arith.constant 0 : i32
    %c0_i32_1 = arith.constant 0 : i32
    return %2, %c0_i32_0 : i32, i32
  }
  func.func @transform_2(%arg0: i32, %arg1: i32) -> (i32, i32) {
    %c0_i32 = arith.constant 0 : i32
    %c0_i32_0 = arith.constant 0 : i32
    return %arg0, %c0_i32 : i32, i32
  }
}

</mosaic_0001>

<llo_original>
// kernel: bce_blur_with_logits_loss.1
$region0: #{bce_blur_with_logits_loss.1}
  #allocation0 [shape = 'u32[]', space=smem, size = 0x4, offset = 0x4, fixed_abs, tag = 'smem constant byte address 0x4 - core index']
  #allocation1 [shape = 'u32[144,128]{1,0:T(1,128)}', space=vmem, size = 0x12000, scoped, tag = 'internal scratch']
  #allocation2 [shape = 'f32[8,128]{1,0:T(8,128)}', space=vmem, size = 0x1000, scoped, tag = 'scratch operand']
  %s0 = inlined_call_operand.vmem [shape: f32[16,128], index: 0, kind: input, shape index: {}]
  %s1 = inlined_call_operand.vmem [shape: f32[16,128], index: 1, kind: input, shape index: {}]
  %s2 = inlined_call_operand.hbm [shape: f32[1,1], index: 2, kind: output, shape index: {}]
  %s3 = sld [smem:[#allocation0]]
  $region34: #{bce_blur_with_logits_loss.1} parent=0
    _
  %s5 = ssub.s32 1, %s3
  %s6 = scalar_select 0, %s5, %s3
  $region1: #{bce_blur_with_logits_loss.1} parent=0
    #allocation3 [shape = 'u8[512]{0}', space=smem, size = 0x200, scoped, tag = 'output window, operand 0, single buffered']
    #allocation4 [shape = 's32[1]{0}', space=sflag, size = 0x4, scoped, tag = 'scoped memory for bce_blur_with_logits_loss.1']
    %7 = vsyncpa [#allocation4], 0
    // Predicated region
    $region2: #{bce_blur_with_logits_loss.1} parent=1 // pred_check
      _
    $region3: #{bce_blur_with_logits_loss.1} parent=1 // pred_check_branch
      %9 = sbr.rel (0) target = $region5
    $region4: #{bce_blur_with_logits_loss.1} parent=1 // pred_region
      %s10 = sadd.s32 0, 0
      %p11 = scmp.lt.s32.totalorder %s10, 0
      %s12 = scalar_select %p11, %s10, 0
      %s13 = smul.u32 2, %s12
      %p14 = scmp.lt.s32.totalorder %s13, 1
      %s15 = scalar_select %p14, %s13, 1
      %s16 = smul.addr %s15, 8
      %s17 = scalar_lea.vmem %s0, %s16
      %s18 = sadd.s32 0, 0
      %p19 = scmp.lt.s32.totalorder %s18, 0
      %s20 = scalar_select %p19, %s18, 0
      %s21 = smul.u32 2, %s20
    $region5: #{bce_blur_with_logits_loss.1} parent=1 // pred_fallthru
      _
    // Predicated region
    $region6: #{bce_blur_with_logits_loss.1} parent=1 // pred_check
      _
    $region7: #{bce_blur_with_logits_loss.1} parent=1 // pred_check_branch
      %23 = sbr.rel (0) target = $region9
    $region8: #{bce_blur_with_logits_loss.1} parent=1 // pred_region
      %s24 = sadd.s32 0, 0
      %p25 = scmp.lt.s32.totalorder %s24, 0
      %s26 = scalar_select %p25, %s24, 0
      %s27 = smul.u32 2, %s26
      %p28 = scmp.lt.s32.totalorder %s27, 1
      %s29 = scalar_select %p28, %s27, 1
      %s30 = smul.addr %s29, 8
      %s31 = scalar_lea.vmem %s1, %s30
      %s32 = sadd.s32 0, 0
      %p33 = scmp.lt.s32.totalorder %s32, 0
      %s34 = scalar_select %p33, %s32, 0
      %s35 = smul.u32 2, %s34
    $region9: #{bce_blur_with_logits_loss.1} parent=1 // pred_fallthru
      _
    %s36 = sadd.s32 0, 0
    %p37 = scmp.lt.s32.totalorder %s36, 0
    %s38 = scalar_select %p37, %s36, 0
    %s39 = smul.u32 2, %s38
    %p40 = scmp.lt.s32.totalorder %s39, 1
    %s41 = scalar_select %p40, %s39, 1
    %s42 = smul.addr %s41, 8
    %s43 = scalar_lea.vmem %s0, %s42
    %s44 = sadd.s32 0, 0
    %p45 = scmp.lt.s32.totalorder %s44, 0
    %s46 = scalar_select %p45, %s44, 0
    %s47 = smul.u32 2, %s46
    %p48 = scmp.lt.s32.totalorder %s47, 1
    %s49 = scalar_select %p48, %s47, 1
    %s50 = smul.addr %s49, 8
    %s51 = scalar_lea.vmem %s1, %s50
    %s52 = sadd.s32 0, 0
    %p53 = scmp.lt.s32.totalorder %s52, 0
    %s54 = scalar_select %p53, %s52, 0
    %s55 = smul.u32 2, %s54
    %p56 = scmp.lt.s32.totalorder %s55, 1
    %s57 = scalar_select %p56, %s55, 1
    %s58 = smul.addr %s57, 8
    %s59 = scalar_lea.vmem %s0, %s58
    %s60 = sadd.s32 0, 0
    %p61 = scmp.lt.s32.totalorder %s60, 0
    %s62 = scalar_select %p61, %s60, 0
    %s63 = smul.u32 2, %s62
    %s64 = sadd.s32 0, 0
    %p65 = scmp.lt.s32.totalorder %s64, 0
    %s66 = scalar_select %p65, %s64, 0
    %s67 = smul.u32 2, %s66
    %p68 = scmp.lt.s32.totalorder %s67, 1
    %s69 = scalar_select %p68, %s67, 1
    %s70 = smul.addr %s69, 8
    %s71 = scalar_lea.vmem %s1, %s70
    %s72 = sadd.s32 0, 0
    %p73 = scmp.lt.s32.totalorder %s72, 0
    %s74 = scalar_select %p73, %s72, 0
    %s75 = smul.u32 2, %s74
    %p76 = scmp.eq.s32.totalorder 0, 0
    // Predicated region
    $region10: #{bce_blur_with_logits_loss.1} parent=1 // pred_check
      %p77 = pneg %p76
    $region11: #{bce_blur_with_logits_loss.1} parent=1 // pred_check_branch
      %79 = sbr.rel (%p77) target = $region13
    $region12: #{bce_blur_with_logits_loss.1} parent=1 // pred_region
      %80 = vst [vmem:[#allocation2] sm:$0xff] 0.0
    $region13: #{bce_blur_with_logits_loss.1} parent=1 // pred_fallthru
      _
    %v81 = vld [vmem:[%s59] sm:$0xff]
    %v82 = vld [vmem:[%s59 + $0x8] sm:$0xff]
    %v83 = vld [vmem:[%s71] sm:$0xff]
    %v84 = vld [vmem:[%s71 + $0x8] sm:$0xff]
    %v85 = vand.u32 2147483647, %v81
    %v86 = vand.u32 2147483647, %v82
    %v87 = vsub.f32 0.0, %v85
    %v88 = vsub.f32 0.0, %v86
    %v89 = vmul.f32 %v87, 1.442695
    %v90 = vpow.pop %v89
    %v91 = vmul.f32 %v88, 1.442695
    %v92 = vpow.pop %v91
    %v93 = vmax.f32 %v81, 0.0
    %v94 = vmax.f32 %v82, 0.0
    %v95 = vmul.f32 %v81, %v83
    %v96 = vmul.f32 %v82, %v84
    %v97 = vsub.f32 %v93, %v95
    %v98 = vsub.f32 %v94, %v96
    %v99 = vadd.f32 %v90, 1.0
    %v100 = vlog2.pop %v99
    %v101 = vmul.f32 %v100, 0.6931472
    %v102 = vmul.f32 -0.5, %v90
    %v103 = vadd.f32 %v102, 1.0
    %v104 = vmul.f32 %v103, %v90
    %v105 = vand.u32 2147483647, %v90
    %vm106 = vcmp.lt.f32.partialorder %v105, 0.0004427343
    %v107 = vsel %vm106, %v104, %v101
    %v108 = vadd.f32 %v92, 1.0
    %v109 = vlog2.pop %v108
    %v110 = vmul.f32 %v109, 0.6931472
    %v111 = vmul.f32 -0.5, %v92
    %v112 = vadd.f32 %v111, 1.0
    %v113 = vmul.f32 %v112, %v92
    %v114 = vand.u32 2147483647, %v92
    %vm115 = vcmp.lt.f32.partialorder %v114, 0.0004427343
    %v116 = vsel %vm115, %v113, %v110
    %v117 = vadd.f32 %v97, %v107
    %v118 = vadd.f32 %v98, %v116
    %v119 = vadd.f32 %v90, 1.0
    %v120 = vadd.f32 %v92, 1.0
    %v121 = vrcp.pop %v119
    %v122 = vmul.f32 1.0, %v121
    %v123 = vrcp.pop %v120
    %v124 = vmul.f32 1.0, %v123
    %vm125 = vcmp.ge.f32.partialorder %v81, 0.0
    %vm126 = vcmp.ge.f32.partialorder %v82, 0.0
    %v127 = vmul.f32 %v90, %v122
    %v128 = vmul.f32 %v92, %v124
    %v129 = vsel %vm125, %v122, %v127
    %v130 = vsel %vm126, %v124, %v128
    %v131 = vsub.f32 %v129, %v83
    %v132 = vsub.f32 %v130, %v84
    %v133 = vsub.f32 %v131, 1.0
    %v134 = vsub.f32 %v132, 1.0
    %v135 = vmul.f32 %v133, 19.96008
    %v136 = vmul.f32 %v134, 19.96008
    %v137 = vmul.f32 %v135, 1.442695
    %v138 = vpow.pop %v137
    %v139 = vmul.f32 %v136, 1.442695
    %v140 = vpow.pop %v139
    %v141 = vsub.f32 1.0, %v138
    %v142 = vsub.f32 1.0, %v140
    %v143 = vmul.f32 %v117, %v141
    %v144 = vmul.f32 %v118, %v142
    %s145 = sadd.s32 0, 0
    %p146 = scmp.lt.s32.totalorder %s145, 1
    // Predicated region
    $region14: #{bce_blur_with_logits_loss.1} parent=1 // pred_check
      %p147 = pneg %p146
    $region15: #{bce_blur_with_logits_loss.1} parent=1 // pred_check_branch
      %149 = sbr.rel (%p147) target = $region17
    $region16: #{bce_blur_with_logits_loss.1} parent=1 // pred_region
      %v150 = vld [vmem:[#allocation2] sm:$0xff]
      %v151 = vadd.f32 %v143, %v144
      %v152 = vadd.f32 %v150, %v151
      %153 = vst [vmem:[#allocation2] sm:$0xff] %v152
    $region17: #{bce_blur_with_logits_loss.1} parent=1 // pred_fallthru
      _
    %p154 = scmp.ge.s32.totalorder %s145, 1
    // Predicated region
    $region18: #{bce_blur_with_logits_loss.1} parent=1 // pred_check
      %p155 = pneg %p154
    $region19: #{bce_blur_with_logits_loss.1} parent=1 // pred_check_branch
      %157 = sbr.rel (%p155) target = $region21
    $region20: #{bce_blur_with_logits_loss.1} parent=1 // pred_region
      %s158 = smul.u32 %s145, 2048
      %v159 = vlaneseq
      %v160 = vshrl.u32 %v159, 7
      %v161 = vadd.s32 %v160, 8
      %v162 = vlaneseq
      %v163 = vand.u32 %v162, 127
      %v164 = vmul.u32 %v160, 128
      %v165 = vmul.u32 %v161, 128
      %v166 = vstv %s158
      %v167 = vadd.s32 %v166, %v164
      %v168 = vadd.s32 %v166, %v165
      %v169 = vadd.s32 %v167, %v163
      %v170 = vadd.s32 %v168, %v163
      %vm171 = vcmp.lt.s32.totalorder %v169, 2048
      %vm172 = vcmp.lt.s32.totalorder %v170, 2048
      %v173 = vsel %vm171, %v143, 0.0
      %v174 = vsel %vm172, %v144, 0.0
      %v175 = vld [vmem:[#allocation2] sm:$0xff]
      %v176 = vadd.f32 %v173, %v174
      %v177 = vadd.f32 %v175, %v176
      %178 = vst [vmem:[#allocation2] sm:$0xff] %v177
    $region21: #{bce_blur_with_logits_loss.1} parent=1 // pred_fallthru
      _
    // Predicated region
    $region22: #{bce_blur_with_logits_loss.1} parent=1 // pred_check
      %p179 = pneg %p76
    $region23: #{bce_blur_with_logits_loss.1} parent=1 // pred_check_branch
      %181 = sbr.rel (%p179) target = $region25
    $region24: #{bce_blur_with_logits_loss.1} parent=1 // pred_region
      %v182 = vld [vmem:[#allocation2] sm:$0xff]
      %183 = vadd.xlane.f32.xlu0 %v182
      %v184 = vpop.xlane.xlu0 %183
      %v185 = vrot.slane %v184, 4
      %v186 = vadd.f32 %v184, %v185
      %v187 = vrot.slane %v186, 2
      %v188 = vadd.f32 %v186, %v187
      %v189 = vrot.slane %v188, 1
      %v190 = vadd.f32 %v188, %v189
      %s191 = vtos %v190
      %s192 = scalar_lea.smem [#allocation3], 0
      %193 = sst [smem:[%s192]] %s191
    $region25: #{bce_blur_with_logits_loss.1} parent=1 // pred_fallthru
      _
    // Predicated region
    $region26: #{bce_blur_with_logits_loss.1} parent=1 // pred_check
      _
    $region27: #{bce_blur_with_logits_loss.1} parent=1 // pred_check_branch
      %195 = sbr.rel (0) target = $region29
    $region28: #{bce_blur_with_logits_loss.1} parent=1 // pred_region
      %s197 = ssub.s32 16, 16
      %198 = vsyncadd [#allocation4], %s197
      %201 = dma.smem_to_hbm [#allocation3], 16, %s2, [#allocation4]
    $region29: #{bce_blur_with_logits_loss.1} parent=1 // pred_fallthru
      _
    // Predicated region
    $region30: #{bce_blur_with_logits_loss.1} parent=1 // pred_check
      _
    $region31: #{bce_blur_with_logits_loss.1} parent=1 // pred_check_branch
      %203 = sbr.rel (0) target = $region33
    $region32: #{bce_blur_with_logits_loss.1} parent=1 // pred_region
      %204 = dma.done [#allocation4], 16
    $region33: #{bce_blur_with_logits_loss.1} parent=1 // pred_fallthru
      _
    %205 = sfence
    %206 = vsyncpa [#allocation4], 1

</llo_original>
